<compile_context>
chip_gen: v6e
topology: v6e:2x2x1
jax: 0.10.0
libtpu: 0.0.40
codegen_flags: <defaults>
</compile_context>

<pallas_src>
import functools

import jax
import jax.numpy as jnp
from jax.experimental import pallas as pl
from jax.experimental.pallas import tpu as pltpu

FULL_SEQ = 96  # copy_configs.seq_len == copy_configs.pred_len == 96


def _timepfn_head_kernel(x_ref, w_ref, o_ref):
    """One lane-tile of the folded temporal projection.

    x_ref: (K, tile_n)        bf16 input (time on sublanes, B*C on lanes)
    w_ref: (pred_len, K)      bf16 folded head weights (mean-pad baked in)
    o_ref: (pred_len, tile_n) output block
    """
    o_ref[...] = jnp.dot(
        w_ref[...], x_ref[...], preferred_element_type=jnp.float32
    ).astype(o_ref.dtype)


def _round_up(x, m):
    return ((x + m - 1) // m) * m


def _plan_lanes(n, *, max_tile=4096, single_tile_max=1024):
    """Pick (tile_n, padded_n) for the flattened B*C lane axis.

    - pad to a multiple of 128 lanes (unmasked vst, exact grid divisibility)
    - small N: one fat block (grid-step overhead dominates otherwise)
    - large N: at least 2 tiles (v7x dual TensorCore), tile capped at 4096
      lanes so double-buffered VMEM stays well under every generation's limit.
    """
    n128 = _round_up(n, 128)
    if n128 <= single_tile_max:
        return n128, n128
    k = max(2, -(-n128 // max_tile))          # number of lane tiles
    tile = _round_up(-(-n128 // k), 128)      # <= max_tile, multiple of 128
    return tile, k * tile


def timepfn_wrapper_forward(x_enc, x_mark_enc, x_dec, x_mark_dec, w,
                            *, seq_len, pred_len, use_pallas=True):
    """Mirrors Model.forward of TimePFN_wrapper_mean.py."""
    del x_mark_enc, x_dec, x_mark_dec  # unused by the synthetic inner model
    B, L, C = x_enc.shape
    assert L == seq_len
    N = B * C

    # Fold the mean front-padding into the temporal head weights (exact
    # algebraic identity in f32):
    #   dec[t] = sum_{s<pad} w[t,s]*mean + sum_{s>=pad} w[t,s]*x[s-pad]
    #          = (w[t,pad:] + row_sum(w[t,:pad]) / seq_len) @ x
    wf = w.astype(jnp.float32)
    if seq_len >= FULL_SEQ:
        x_use = x_enc[:, -FULL_SEQ:, :]       # else-branch: last 96 steps
        K = FULL_SEQ
        w_eff = wf[:pred_len, :]
    else:
        pad_len = FULL_SEQ - seq_len
        x_use = x_enc
        K = seq_len
        w_eff = (wf[:pred_len, pad_len:]
                 + jnp.sum(wf[:pred_len, :pad_len], axis=1, keepdims=True)
                 * (1.0 / seq_len))
    w_mxu = w_eff.astype(jnp.bfloat16)        # (pred_len, K) bf16

    if not use_pallas:
        # Tiny-N bypass: at N ~ 8 the pallas_call fixed overhead + layout
        # plumbing exceed any kernel win; do the folded matmul in plain XLA.
        dec = jnp.einsum("tk,bkc->btc", w_mxu, x_use.astype(jnp.bfloat16),
                         preferred_element_type=jnp.float32)
        return dec.astype(x_enc.dtype)

    # Layout plumbing: (B, K, C) -> (K, B*C) with bf16 cast fused in, so the
    # batch*channel axis is lane-dense inside the kernel.
    x_t = jnp.transpose(x_use, (1, 0, 2)).reshape(K, N).astype(jnp.bfloat16)

    tile_n, n_pad = _plan_lanes(N)
    if n_pad != N:
        x_t = jnp.pad(x_t, ((0, 0), (0, n_pad - N)))
    grid_n = n_pad // tile_n

    out_itemsize = jnp.dtype(x_enc.dtype).itemsize
    cost = pl.CostEstimate(
        flops=2 * pred_len * K * n_pad,
        transcendentals=0,
        bytes_accessed=(K * n_pad * 2                 # bf16 input
                        + grid_n * pred_len * K * 2   # bf16 resident weights
                        + pred_len * n_pad * out_itemsize))

    dec_flat = pl.pallas_call(
        _timepfn_head_kernel,
        out_shape=jax.ShapeDtypeStruct((pred_len, n_pad), x_enc.dtype),
        grid_spec=pltpu.PrefetchScalarGridSpec(
            num_scalar_prefetch=0,
            grid=(grid_n,),
            in_specs=[
                pl.BlockSpec((K, tile_n), lambda j: (0, j)),
                pl.BlockSpec((pred_len, K), lambda j: (0, 0)),
            ],
            out_specs=pl.BlockSpec((pred_len, tile_n), lambda j: (0, j)),
        ),
        compiler_params=pltpu.CompilerParams(
            dimension_semantics=("parallel",)),
        cost_estimate=cost,
    )(x_t, w_mxu)

    # (pred_len, n_pad) -> (B, pred_len, C); drop the lane padding.
    dec_flat = dec_flat[:, :N]
    return jnp.transpose(dec_flat.reshape(pred_len, B, C), (1, 0, 2))


def _reference_forward(x_enc, w, *, seq_len, pred_len):
    """Pure-JAX f32 reference of the PyTorch wrapper semantics."""
    xf = x_enc.astype(jnp.float32)
    if seq_len >= FULL_SEQ:
        x_pad = xf[:, -FULL_SEQ:, :]
    else:
        mean_val = jnp.mean(xf, axis=1, keepdims=True)
        mean_rep = jnp.repeat(mean_val, FULL_SEQ - seq_len, axis=1)
        x_pad = jnp.concatenate([mean_rep, xf], axis=1)
    dec = jnp.einsum("ts,bsc->btc", w[:pred_len, :].astype(jnp.float32), x_pad)
    return dec.astype(x_enc.dtype)


if __name__ == "__main__":
    # Small shapes implied by the forward: B=2, seq_len=8, pred_len=4,
    # enc channels C=4, time-mark features = 3.
    B, SEQ_LEN, PRED_LEN, C, MARK = 2, 8, 4, 4, 3

    key = jax.random.PRNGKey(0)
    k1, k2, k3, k4, k5 = jax.random.split(key, 5)
    x_enc = jax.random.normal(k1, (B, SEQ_LEN, C), dtype=jnp.float32)
    x_mark_enc = jax.random.normal(k2, (B, SEQ_LEN, MARK), dtype=jnp.float32)
    x_dec = jax.random.normal(k3, (B, PRED_LEN, C), dtype=jnp.float32)
    x_mark_dec = jax.random.normal(k4, (B, PRED_LEN, MARK), dtype=jnp.float32)

    # Deterministic synthetic weights for the stand-in TimePFN head.
    w = jax.random.normal(k5, (FULL_SEQ, FULL_SEQ), dtype=jnp.float32)
    w = w / jnp.sqrt(jnp.float32(FULL_SEQ))

    fwd = jax.jit(functools.partial(
        timepfn_wrapper_forward, seq_len=SEQ_LEN, pred_len=PRED_LEN,
        use_pallas=True))
    out = jax.block_until_ready(fwd(x_enc, x_mark_enc, x_dec, x_mark_dec, w))

    ref = _reference_forward(x_enc, w, seq_len=SEQ_LEN, pred_len=PRED_LEN)
    assert out.shape == (B, PRED_LEN, C), out.shape
    assert jnp.allclose(out, ref, atol=2e-2, rtol=2e-2), "pallas path mismatch"

    # Sanity-check the tiny-N XLA bypass option against the same reference.
    out_xla = timepfn_wrapper_forward(
        x_enc, x_mark_enc, x_dec, x_mark_dec, w,
        seq_len=SEQ_LEN, pred_len=PRED_LEN, use_pallas=False)
    assert jnp.allclose(out_xla, ref, atol=2e-2, rtol=2e-2), "bypass mismatch"

    print("KERNEL_OK")
</pallas_src>

<mosaic_0001>
module attributes {stable_mosaic.version = 11 : i64} {
  func.func @_timepfn_head_kernel(%arg0: i32, %arg1: memref<8x128xbf16, #tpu.memory_space<vmem>>, %arg2: memref<4x8xbf16, #tpu.memory_space<vmem>>, %arg3: memref<4x128xf32, #tpu.memory_space<vmem>>) attributes {dimension_semantics = [#tpu.dimension_semantics<parallel>], iteration_bounds = array<i64: 1>, scalar_prefetch = 0 : i64, scratch_operands = 0 : i64, tpu.core_type = #tpu.core_type<tc>, window_params = [{transform_indices = @transform_0, window_bounds = array<i64: 8, 128>}, {pipeline_mode = #tpu.pipeline_mode<synchronous>, transform_indices = @transform_1, window_bounds = array<i64: 4, 8>}, {transform_indices = @transform_2, window_bounds = array<i64: 4, 128>}]} {
    %c0 = arith.constant 0 : index
    %c0_0 = arith.constant 0 : index
    %0 = vector.load %arg2[%c0, %c0_0] : memref<4x8xbf16, #tpu.memory_space<vmem>>, vector<4x8xbf16>
    %c0_1 = arith.constant 0 : index
    %c0_2 = arith.constant 0 : index
    %1 = vector.load %arg1[%c0_1, %c0_2] : memref<8x128xbf16, #tpu.memory_space<vmem>>, vector<8x128xbf16>
    %cst = arith.constant dense<0.000000e+00> : vector<4x128xf32>
    %2 = tpu.matmul %0, %1, %cst {dimension_numbers = #tpu.dot_dimension_numbers<[1], [0], [0], [1], [0, 0, 1, 1], [], []>} : vector<4x8xbf16>, vector<8x128xbf16>, vector<4x128xf32> -> vector<4x128xf32>
    %c0_3 = arith.constant 0 : index
    %c0_4 = arith.constant 0 : index
    %3 = vector.load %arg3[%c0_3, %c0_4] : memref<4x128xf32, #tpu.memory_space<vmem>>, vector<4x128xf32>
    tpu.vector_store %arg3[%c0_3, %c0_4], %2 {strides = array<i32>} : memref<4x128xf32, #tpu.memory_space<vmem>>, vector<4x128xf32>,
    return
  }
  func.func @transform_0(%arg0: i32) -> (i32, i32) {
    %c0_i32 = arith.constant 0 : i32
    %c0_i32_0 = arith.constant 0 : i32
    return %c0_i32, %arg0 : i32, i32
  }
  func.func @transform_1(%arg0: i32) -> (i32, i32) {
    %c0_i32 = arith.constant 0 : i32
    %c0_i32_0 = arith.constant 0 : i32
    %c0_i32_1 = arith.constant 0 : i32
    return %c0_i32, %c0_i32_0 : i32, i32
  }
  func.func @transform_2(%arg0: i32) -> (i32, i32) {
    %c0_i32 = arith.constant 0 : i32
    %c0_i32_0 = arith.constant 0 : i32
    return %c0_i32, %arg0 : i32, i32
  }
}

</mosaic_0001>

<llo_original>
// kernel: timepfn_wrapper_forward.1
$region0: #{timepfn_wrapper_forward.1}
  #allocation0 [shape = 'u32[]', space=smem, size = 0x4, offset = 0x4, fixed_abs, tag = 'smem constant byte address 0x4 - core index']
  #allocation1 [shape = 'u32[144,128]{1,0:T(1,128)}', space=vmem, size = 0x12000, scoped, tag = 'internal scratch']
  %s0 = inlined_call_operand.vmem [shape: bf16[8,128], index: 0, kind: input, shape index: {}]
  %s1 = inlined_call_operand.vmem [shape: bf16[4,8], index: 1, kind: input, shape index: {}]
  %s2 = inlined_call_operand.vmem [shape: f32[4,128], index: 2, kind: output, shape index: {}]
  %s3 = sld [smem:[#allocation0]]
  $region18: #{timepfn_wrapper_forward.1} parent=0
    _
  %s5 = ssub.s32 1, %s3
  %s6 = scalar_select 0, %s5, %s3
  // Predicated region
  $region2: #{timepfn_wrapper_forward.1} parent=0 // pred_check
    _
  $region3: #{timepfn_wrapper_forward.1} parent=0 // pred_check_branch
    %8 = sbr.rel (0) target = $region5
  $region4: #{timepfn_wrapper_forward.1} parent=0 // pred_region
    _
  $region5: #{timepfn_wrapper_forward.1} parent=0 // pred_fallthru
    _
  // Predicated region
  $region6: #{timepfn_wrapper_forward.1} parent=0 // pred_check
    _
  $region7: #{timepfn_wrapper_forward.1} parent=0 // pred_check_branch
    %10 = sbr.rel (0) target = $region9
  $region8: #{timepfn_wrapper_forward.1} parent=0 // pred_region
    _
  $region9: #{timepfn_wrapper_forward.1} parent=0 // pred_fallthru
    _
  %v12 = vld [vmem:[%s1] sm:$0x3]
  %v13 = vld [vmem:[%s0] sm:$0xf]
  %vm14 = vcmask 64512
  %v16 = vsel %vm14, %v12, 0
  %vm18 = vcmask 1043456
  %v20 = vsel %vm18, %v13, 0
  %22 = vmatprep.subr.bf16.mxu0 0
  %23 = vmatpush1.bf16.msra.mxu0 0
  %24 = vmatprep.subr.bf16.mxu0 0
  %25 = vmatpush1.bf16.msra.mxu0 0
  %26 = vmatprep.subr.bf16.mxu0 0
  %27 = vmatpush1.bf16.msra.mxu0 0
  %28 = vmatprep.subr.bf16.mxu0 0
  %29 = vmatpush1.bf16.msra.mxu0 0
  %30 = vmatprep.subr.bf16.mxu0 0
  %31 = vmatpush1.bf16.msra.mxu0 0
  %32 = vmatprep.subr.bf16.mxu0 0
  %33 = vmatpush1.bf16.msra.mxu0 0
  %34 = vmatprep.subr.bf16.mxu0 0
  %35 = vmatpush1.bf16.msra.mxu0 0
  %36 = vmatprep.subr.bf16.mxu0 0
  %37 = vmatpush1.bf16.msra.mxu0 %v20
  %38 = vmatprep.subr.bf16.mxu0 0
  %39 = vmatpush2.bf16.msra.mxu0 0
  %40 = vmatprep.subr.bf16.mxu0 0
  %41 = vmatpush2.bf16.msra.mxu0 0
  %42 = vmatprep.subr.bf16.mxu0 0
  %43 = vmatpush2.bf16.msra.mxu0 0
  %44 = vmatprep.subr.bf16.mxu0 0
  %45 = vmatpush2.bf16.msra.mxu0 0
  %46 = vmatprep.subr.bf16.mxu0 0
  %47 = vmatpush2.bf16.msra.mxu0 0
  %48 = vmatprep.subr.bf16.mxu0 0
  %49 = vmatpush2.bf16.msra.mxu0 0
  %50 = vmatprep.subr.bf16.mxu0 0
  %51 = vmatpush2.bf16.msra.mxu0 0
  %52 = vmatprep.subr.bf16.mxu0 0
  %53 = vmatpush2.bf16.msra.mxu0 0
  %54 = vmatprep.mubr.bf16.mxu0 0
  %55 = vmatmul.mubr.bf16.gmra.mxu0 %v16
  %v56 = vpop.f32.mrf.mxu0
  %v57 = vadd.f32 0.0, %v56
  %v58 = vpop.f32.mrf.mxu0
  %v59 = vpop.f32.mrf.mxu0
  %v60 = vpop.f32.mrf.mxu0
  %61 = vdwg.mxu0
  %62 = vst [vmem:[%s2] sm:$0xf] %v57
  // Predicated region
  $region10: #{timepfn_wrapper_forward.1} parent=0 // pred_check
    _
  $region11: #{timepfn_wrapper_forward.1} parent=0 // pred_check_branch
    %64 = sbr.rel (0) target = $region13
  $region12: #{timepfn_wrapper_forward.1} parent=0 // pred_region
    _
  $region13: #{timepfn_wrapper_forward.1} parent=0 // pred_fallthru
    _
  // Predicated region
  $region14: #{timepfn_wrapper_forward.1} parent=0 // pred_check
    _
  $region15: #{timepfn_wrapper_forward.1} parent=0 // pred_check_branch
    %66 = sbr.rel (0) target = $region17
  $region16: #{timepfn_wrapper_forward.1} parent=0 // pred_region
    _
  $region17: #{timepfn_wrapper_forward.1} parent=0 // pred_fallthru
    _

</llo_original>
